<compile_context>
chip_gen: v7x
topology: tpu7x:2x2x1
jax: 0.10.0
libtpu: 0.0.40
codegen_flags: <defaults>
</compile_context>

<pallas_src>
from functools import partial

import jax
import jax.numpy as jnp
from jax.experimental import pallas as pl
from jax.experimental.pallas import tpu as pltpu


def _cdiv(a, b):
    return -(-a // b)


def _round_up(v, m):
    return ((v + m - 1) // m) * m


def _cvti_matmul_kernel(p_ref, w_ref, b_ref, o_ref, *, after):
    """One M-tile: bf16 matmul (full K resident) -> f32 -> bias -> after-act."""
    acc = jnp.dot(p_ref[...], w_ref[...], preferred_element_type=jnp.float32)
    acc = acc + b_ref[...]
    if after == "Tanh":
        acc = jnp.tanh(acc)
    elif after == "sigmoid":
        acc = jax.nn.sigmoid(acc)
    o_ref[...] = acc.astype(o_ref.dtype)


def cvti_forward(x, weight, bias, *, before=None, after=False, tm=None):
    """before-act -> ConvTranspose2d(k=4, s=2, p=1) + bias -> after-act.

    x:      (N, Cin, H, W)      float32, NCHW (PyTorch layout)
    weight: (Cin, Cout, 4, 4)   PyTorch ConvTranspose2d weight layout
    bias:   (Cout,)
    returns (N, Cout, 2H, 2W)   float32, NCHW
    """
    if after == "BN":
        # TODO(synk): after='BN' (training-mode batch-stats BatchNorm2d) needs a
        # cross-tile (N,H,W) reduction pass; not implemented in this kernel.
        raise NotImplementedError("CvTi after='BN' is not supported")

    N, Cin, H, W = x.shape
    cin_w, Cout, KH, KW = weight.shape
    assert cin_w == Cin and (KH, KW) == (4, 4), "CvTi expects a 4x4 kernel"
    OH, OW = 2 * H, 2 * W

    # ---- `before` activation once on x, then straight to bf16 ---------------
    xf = x.astype(jnp.float32)
    if before == "ReLU":
        xf = jnp.maximum(xf, 0.0)
    elif before == "LReLU":
        xf = jnp.where(xf >= 0.0, xf, 0.2 * xf)   # module uses slope 0.2
    xb = xf.astype(jnp.bfloat16)

    # ---- compact sub-pixel patch matrix (bf16, single materialization) ------
    # Pad 1 pixel per spatial side (NHWC). Every output pixel of every parity
    # is a dot of ONE 2x2 window of xp with a 2x2 sub-kernel.
    x_nhwc = jnp.transpose(xb, (0, 2, 3, 1))                 # (N, H, W, Cin)
    xp = jnp.pad(x_nhwc, ((0, 0), (1, 1), (1, 1), (0, 0)))   # (N, H+2, W+2, Cin)

    HA, WA = H + 1, W + 1                                    # window anchors
    taps = [xp[:, a:a + HA, b:b + WA, :] for a in (0, 1) for b in (0, 1)]
    P = jnp.concatenate(taps, axis=-1).reshape(N * HA * WA, 4 * Cin)

    # ---- weight -> (4*Cin, 4*Cout) ------------------------------------------
    # Row block (a,b) = window tap; column block p' = 2*ph' + pw' where the
    # output pixel of anchor (h,w) is (2h + ph' - 1, 2w + pw' - 1).  With this
    # ordering the epilogue un-shuffle is a pure depth-to-space + 1-pixel crop.
    # Sub-kernel entry: W[:, :, ph' + 2 - 2a, pw' + 2 - 2b].
    wm_rows = []
    for a in (0, 1):
        for b in (0, 1):
            cols = []
            for ph in (0, 1):
                for pw in (0, 1):
                    cols.append(weight[:, :, ph + 2 - 2 * a, pw + 2 - 2 * b])
            wm_rows.append(jnp.concatenate(cols, axis=1))    # (Cin, 4*Cout)
    Wm = jnp.concatenate(wm_rows, axis=0).astype(jnp.bfloat16)  # (4Cin, 4Cout)
    bvec = jnp.tile(bias.astype(jnp.float32), 4)             # (4*Cout,)

    # ---- TPU-friendly padding (bf16 operands, lane-dense output) ------------
    M, K = P.shape
    C4 = 4 * Cout
    Kp = _round_up(K, 128)
    Cp4 = _round_up(C4, 128)

    # Generation-aware VMEM budget.
    try:
        vmem_cap = int(pltpu.get_tpu_info().vmem_capacity_bytes)
    except Exception:
        vmem_cap = 64 * 1024 * 1024
    budget = (vmem_cap * 3) // 4

    # Largest tm whose (double-buffered) per-step footprint fits the budget:
    #   2*tm*Kp*2 (P bf16) + 2*Kp*Cp4*2 (W bf16) + 2*tm*Cp4*4 (out f32) + bias
    fixed = 4 * Kp * Cp4 + 8 * Cp4
    tm_cap = max(128, ((budget - fixed) // (4 * Kp + 8 * Cp4) // 128) * 128)
    if tm is None:
        tm = 2048 if vmem_cap >= 100 * 1024 * 1024 else 1024
    tm_target = min(max(128, (tm // 128) * 128), tm_cap)

    # Balance tiles across the parallel M axis (v7x megacore): an even number
    # of near-equal tiles, so no core gets a mostly-padding tail tile.
    n_pairs = max(1, _cdiv(M, 2 * tm_target))
    tm_eff = max(128, min(_round_up(_cdiv(M, 2 * n_pairs), 128), tm_cap))
    Mp = _round_up(M, tm_eff)
    n_m = Mp // tm_eff

    P_pad = jnp.pad(P, ((0, Mp - M), (0, Kp - K)))                 # bf16
    W_pad = jnp.pad(Wm, ((0, Kp - K), (0, Cp4 - C4)))              # bf16
    b_pad = jnp.pad(bvec[None, :], ((0, 0), (0, Cp4 - C4)))        # f32 (1, Cp4)

    per_step = (2 * tm_eff * Kp * 2      # P tile, bf16, double-buffered
                + 2 * Kp * Cp4 * 2       # W (resident), bf16
                + 2 * tm_eff * Cp4 * 4   # output tile, f32, double-buffered
                + 2 * Cp4 * 4)           # bias row
    vmem_limit = int(min(max(2 * per_step, 16 * 1024 * 1024), budget))

    cost = pl.CostEstimate(
        flops=2 * Mp * Kp * Cp4,
        transcendentals=(Mp * Cp4 if after in ("Tanh", "sigmoid") else 0),
        bytes_accessed=Mp * Kp * 2 + Kp * Cp4 * 2 + Mp * Cp4 * 4 + Cp4 * 4,
    )

    out = pl.pallas_call(
        partial(_cvti_matmul_kernel, after=after),
        out_shape=jax.ShapeDtypeStruct((Mp, Cp4), jnp.float32),
        grid_spec=pltpu.PrefetchScalarGridSpec(
            num_scalar_prefetch=0,
            grid=(n_m,),
            in_specs=[pl.BlockSpec((tm_eff, Kp), lambda i: (i, 0)),
                      pl.BlockSpec((Kp, Cp4), lambda i: (0, 0)),
                      pl.BlockSpec((1, Cp4), lambda i: (0, 0))],
            out_specs=pl.BlockSpec((tm_eff, Cp4), lambda i: (i, 0))),
        compiler_params=pltpu.CompilerParams(
            dimension_semantics=("parallel",),
            vmem_limit_bytes=vmem_limit),
        cost_estimate=cost,
    )(P_pad, W_pad, b_pad)

    # ---- un-shuffle: one depth-to-space transpose straight into NCHW --------
    # out5[n, h, w, ph', pw', c] is the output pixel (2h+ph'-1, 2w+pw'-1);
    # interleave parity with anchors and crop 1 pixel on each spatial side.
    # (Padded tail rows / columns are sliced off by [:M, :C4] first.)
    out5 = out[:M, :C4].reshape(N, HA, WA, 2, 2, Cout)
    y = jnp.transpose(out5, (0, 5, 1, 3, 2, 4)).reshape(N, Cout, 2 * HA, 2 * WA)
    y = y[:, :, 1:1 + OH, 1:1 + OW]                          # (N, Cout, 2H, 2W)
    return y


def _reference(x, weight, bias, *, before, after):
    """Pure-JAX reference (lax dilated conv, f32 HIGHEST) for a sanity check."""
    if before == "ReLU":
        x = jnp.maximum(x, 0.0)
    elif before == "LReLU":
        x = jnp.where(x >= 0.0, x, 0.2 * x)
    w = jnp.flip(weight, axis=(2, 3)).transpose(1, 0, 2, 3)  # (Cout, Cin, 4, 4)
    y = jax.lax.conv_general_dilated(
        x, w, window_strides=(1, 1), padding=[(2, 2), (2, 2)],
        lhs_dilation=(2, 2), dimension_numbers=("NCHW", "OIHW", "NCHW"),
        precision=jax.lax.Precision.HIGHEST)
    y = y + bias[None, :, None, None]
    if after == "Tanh":
        y = jnp.tanh(y)
    elif after == "sigmoid":
        y = jax.nn.sigmoid(y)
    return y


if __name__ == "__main__":
    key = jax.random.PRNGKey(0)
    k_x, k_w, k_b = jax.random.split(key, 3)

    N, Cin, H, W = 2, 4, 16, 16
    Cout = 8

    x = jax.random.normal(k_x, (N, Cin, H, W), dtype=jnp.float32)
    # weights_init('gaussian'): weight ~ N(0, 0.02); bias is 0 at init — use a
    # small nonzero bias here to exercise the fused bias path.
    weight = 0.02 * jax.random.normal(k_w, (Cin, Cout, 4, 4), dtype=jnp.float32)
    bias = 0.01 * jax.random.normal(k_b, (Cout,), dtype=jnp.float32)

    for before, after in (("ReLU", "Tanh"), ("LReLU", "sigmoid"), (None, False)):
        y = jax.block_until_ready(
            cvti_forward(x, weight, bias, before=before, after=after))
        y_ref = _reference(x, weight, bias, before=before, after=after)
        assert y.shape == (N, Cout, 2 * H, 2 * W), y.shape
        err = float(jnp.max(jnp.abs(y - y_ref)))
        # bf16 MXU operands with f32 accumulation vs f32 HIGHEST reference.
        assert err < 5e-2, (before, after, err)

    print("KERNEL_OK")
</pallas_src>

<mosaic_0001>
module attributes {stable_mosaic.version = 11 : i64} {
  func.func @_cvti_matmul_kernel(%arg0: i32, %arg1: memref<384x128xbf16, #tpu.memory_space<vmem>>, %arg2: memref<128x128xbf16, #tpu.memory_space<vmem>>, %arg3: memref<1x128xf32, #tpu.memory_space<vmem>>, %arg4: memref<384x128xf32, #tpu.memory_space<vmem>>) attributes {dimension_semantics = [#tpu.dimension_semantics<parallel>], iteration_bounds = array<i64: 2>, scalar_prefetch = 0 : i64, scratch_operands = 0 : i64, tpu.core_type = #tpu.core_type<tc>, window_params = [{transform_indices = @transform_0, window_bounds = array<i64: 384, 128>}, {pipeline_mode = #tpu.pipeline_mode<synchronous>, transform_indices = @transform_1, window_bounds = array<i64: 128, 128>}, {pipeline_mode = #tpu.pipeline_mode<synchronous>, transform_indices = @transform_2, window_bounds = array<i64: 1, 128>}, {transform_indices = @transform_3, window_bounds = array<i64: 384, 128>}]} {
    %c0 = arith.constant 0 : index
    %c0_0 = arith.constant 0 : index
    %0 = vector.load %arg1[%c0, %c0_0] : memref<384x128xbf16, #tpu.memory_space<vmem>>, vector<384x128xbf16>
    %c0_1 = arith.constant 0 : index
    %c0_2 = arith.constant 0 : index
    %1 = vector.load %arg2[%c0_1, %c0_2] : memref<128x128xbf16, #tpu.memory_space<vmem>>, vector<128x128xbf16>
    %cst = arith.constant dense<0.000000e+00> : vector<384x128xf32>
    %2 = tpu.matmul %0, %1, %cst {dimension_numbers = #tpu.dot_dimension_numbers<[1], [0], [0], [1], [0, 0, 1, 1], [], []>} : vector<384x128xbf16>, vector<128x128xbf16>, vector<384x128xf32> -> vector<384x128xf32>
    %c0_3 = arith.constant 0 : index
    %c0_4 = arith.constant 0 : index
    %3 = vector.load %arg3[%c0_3, %c0_4] : memref<1x128xf32, #tpu.memory_space<vmem>>, vector<1x128xf32>
    %4 = vector.broadcast %3 : vector<1x128xf32> to vector<384x128xf32>
    %5 = arith.addf %2, %4 : vector<384x128xf32>
    %6 = math.tanh %5 : vector<384x128xf32>
    %c0_5 = arith.constant 0 : index
    %c0_6 = arith.constant 0 : index
    %7 = vector.load %arg4[%c0_5, %c0_6] : memref<384x128xf32, #tpu.memory_space<vmem>>, vector<384x128xf32>
    tpu.vector_store %arg4[%c0_5, %c0_6], %6 {strides = array<i32>} : memref<384x128xf32, #tpu.memory_space<vmem>>, vector<384x128xf32>,
    return
  }
  func.func @transform_0(%arg0: i32) -> (i32, i32) {
    %c0_i32 = arith.constant 0 : i32
    %c0_i32_0 = arith.constant 0 : i32
    return %arg0, %c0_i32 : i32, i32
  }
  func.func @transform_1(%arg0: i32) -> (i32, i32) {
    %c0_i32 = arith.constant 0 : i32
    %c0_i32_0 = arith.constant 0 : i32
    %c0_i32_1 = arith.constant 0 : i32
    return %c0_i32, %c0_i32_0 : i32, i32
  }
  func.func @transform_2(%arg0: i32) -> (i32, i32) {
    %c0_i32 = arith.constant 0 : i32
    %c0_i32_0 = arith.constant 0 : i32
    %c0_i32_1 = arith.constant 0 : i32
    return %c0_i32, %c0_i32_0 : i32, i32
  }
  func.func @transform_3(%arg0: i32) -> (i32, i32) {
    %c0_i32 = arith.constant 0 : i32
    %c0_i32_0 = arith.constant 0 : i32
    return %arg0, %c0_i32 : i32, i32
  }
}

</mosaic_0001>

<llo_original>
// kernel: tpu_custom_call.1
$region0: #{tpu_custom_call.1}
  #allocation0 [shape = 'u32[]', space=smem, size = 0x4, offset = 0x4, fixed_abs, tag = 'smem constant byte address 0x4 - core index']
  #allocation1 [shape = 'u32[144,128]{1,0:T(1,128)}', space=vmem, size = 0x12000, scoped, tag = 'internal scratch']
  %s0 = inlined_call_operand.hbm [shape: bf16[768,128], index: 0, kind: input, shape index: {}]
  %s1 = inlined_call_operand.hbm [shape: bf16[128,128], index: 1, kind: input, shape index: {}]
  %s2 = inlined_call_operand.vmem [shape: f32[1,128], index: 2, kind: input, shape index: {}]
  %s3 = inlined_call_operand.hbm [shape: f32[768,128], index: 3, kind: output, shape index: {}]
  %s4 = sld [smem:[#allocation0]]
  $region53: #{tpu_custom_call.1} parent=0
    _
  %s6 = ssub.s32 1, %s4
  %s7 = scalar_select 0, %s6, %s4
  $region1: #{tpu_custom_call.1} parent=0
    #allocation2 [shape = 'u8[196608]{0}', space=vmem, size = 0x30000, scoped, tag = 'input window, operand 0']
    #allocation3 [shape = 's32[2]{0}', space=sflag, size = 0x8, scoped, tag = 'scoped memory for tpu_custom_call.1']
    #allocation4 [shape = 's32[2]{0}', space=sflag, size = 0x8, scoped, tag = 'scoped memory for tpu_custom_call.1']
    #allocation5 [shape = 'u8[32768]{0}', space=vmem, size = 0x8000, scoped, tag = 'input window, operand 1, single buffered']
    #allocation6 [shape = 's32[1]{0}', space=sflag, size = 0x4, scoped, tag = 'scoped memory for tpu_custom_call.1']
    #allocation7 [shape = 'u8[393216]{0}', space=vmem, size = 0x60000, scoped, tag = 'output window, operand 0']
    %8 = vsyncpa [#allocation3], 0
    %s9 = scalar_lea.sflag [#allocation3], 1
    %10 = vsyncpa %s9, 0
    %11 = vsyncpa [#allocation6], 0
    %12 = vsyncpa [#allocation4], 0
    %s13 = scalar_lea.sflag [#allocation4], 1
    %14 = vsyncpa %s13, 0
    loop: start=0, step=1, limit=4
    $region2: #{tpu_custom_call.1} parent=1 // loop_pre_header
      _
    $region3: #{tpu_custom_call.1} parent=1 // loop_header
      %s16 = sphi 0, %s20
      %p17 = scmp.ge.s32.totalorder %s16, 4
      %s26 = sphi 0, %s28
      %s29 = sphi 0, %s26
      %s30 = sphi 0, %s29
      %s46 = sphi 0, %s30
      %s50 = sphi 0, %s50
      %s52 = sphi 0, %s50
      %s53 = sphi 0, %s52
      %s67 = sphi 0, %s53
      %s71 = sphi 0, %s71
      %s73 = sphi 0, %s71
      %s74 = sphi 0, %s73
      %s88 = sphi 0, %s74
      %s94 = sphi 0, %s96
      %s97 = sphi 0, %s94
      %s98 = sphi 0, %s97
      %s114 = sphi 0, %s98
    $region4: #{tpu_custom_call.1} parent=1 // loop_header_branch
      %19 = sbr.rel (%p17) target = $region8
    $region5: #{tpu_custom_call.1} parent=1 // loop_body
      %s21 = ssub.s32 %s16, 1
      %s22 = ssub.s32 %s16, 2
      %s23 = sadd.s32 %s16, 1
      %s24 = ssub.s32 %s16, %s23
      %p25 = scmp.eq.s32.totalorder %s24, 0
      %s27 = sadd.s32 %s26, 1
      %s28 = scalar_select %p25, %s26, %s27
      %p31 = pneg %p25
      %p32 = scmp.eq.s32.totalorder %s16, 1
      %p33 = por %p31, %p32
      %p34 = scmp.ne.s32.totalorder %s26, %s29
      %p35 = scmp.eq.s32.totalorder %s16, 0
      %p36 = por %p34, %p35
      %p37 = scmp.ne.s32.totalorder %s26, %s29
      %p38 = scmp.eq.s32.totalorder %s21, 1
      %p39 = por %p37, %p38
      %p40 = scmp.ne.s32.totalorder %s29, %s30
      %p41 = scmp.eq.s32.totalorder %s21, 0
      %p42 = por %p40, %p41
      %p43 = scmp.ne.s32.totalorder %s29, %s30
      %p44 = scmp.eq.s32.totalorder %s22, 1
      %p45 = por %p43, %p44
      %p47 = scmp.ne.s32.totalorder %s30, %s46
      %p48 = scmp.eq.s32.totalorder %s22, 0
      %p49 = por %p47, %p48
      %s51 = sadd.s32 %s50, 1
      %p54 = scmp.eq.s32.totalorder %s16, 1
      %p55 = scmp.ne.s32.totalorder %s50, %s52
      %p56 = scmp.eq.s32.totalorder %s16, 0
      %p57 = por %p55, %p56
      %p58 = scmp.ne.s32.totalorder %s50, %s52
      %p59 = scmp.eq.s32.totalorder %s21, 1
      %p60 = por %p58, %p59
      %p61 = scmp.ne.s32.totalorder %s52, %s53
      %p62 = scmp.eq.s32.totalorder %s21, 0
      %p63 = por %p61, %p62
      %p64 = scmp.ne.s32.totalorder %s52, %s53
      %p65 = scmp.eq.s32.totalorder %s22, 1
      %p66 = por %p64, %p65
      %p68 = scmp.ne.s32.totalorder %s53, %s67
      %p69 = scmp.eq.s32.totalorder %s22, 0
      %p70 = por %p68, %p69
      %s72 = sadd.s32 %s71, 1
      %p75 = scmp.eq.s32.totalorder %s16, 1
      %p76 = scmp.ne.s32.totalorder %s71, %s73
      %p77 = scmp.eq.s32.totalorder %s16, 0
      %p78 = por %p76, %p77
      %p79 = scmp.ne.s32.totalorder %s71, %s73
      %p80 = scmp.eq.s32.totalorder %s21, 1
      %p81 = por %p79, %p80
      %p82 = scmp.ne.s32.totalorder %s73, %s74
      %p83 = scmp.eq.s32.totalorder %s21, 0
      %p84 = por %p82, %p83
      %p85 = scmp.ne.s32.totalorder %s73, %s74
      %p86 = scmp.eq.s32.totalorder %s22, 1
      %p87 = por %p85, %p86
      %p89 = scmp.ne.s32.totalorder %s74, %s88
      %p90 = scmp.eq.s32.totalorder %s22, 0
      %p91 = por %p89, %p90
      %s92 = ssub.s32 %s16, %s23
      %p93 = scmp.eq.s32.totalorder %s92, 0
      %s95 = sadd.s32 %s94, 1
      %s96 = scalar_select %p93, %s94, %s95
      %p99 = pneg %p93
      %p100 = scmp.eq.s32.totalorder %s16, 1
      %p101 = por %p99, %p100
      %p102 = scmp.ne.s32.totalorder %s94, %s97
      %p103 = scmp.eq.s32.totalorder %s16, 0
      %p104 = por %p102, %p103
      %p105 = scmp.ne.s32.totalorder %s94, %s97
      %p106 = scmp.eq.s32.totalorder %s21, 1
      %p107 = por %p105, %p106
      %p108 = scmp.ne.s32.totalorder %s97, %s98
      %p109 = scmp.eq.s32.totalorder %s21, 0
      %p110 = por %p108, %p109
      %p111 = scmp.ne.s32.totalorder %s97, %s98
      %p112 = scmp.eq.s32.totalorder %s22, 1
      %p113 = por %p111, %p112
      %p115 = scmp.ne.s32.totalorder %s98, %s114
      %p116 = scmp.eq.s32.totalorder %s22, 0
      %p117 = por %p115, %p116
      %p118 = scmp.le.s32.totalorder 1, %s16
      %p119 = scmp.lt.s32.totalorder %s16, 3
      %p120 = pnand %p118, %p119
      %p121 = pneg %p120
      // Predicated region
      $region9: #{tpu_custom_call.1} parent=5 // pred_check
        _
      $region10: #{tpu_custom_call.1} parent=5 // pred_check_branch
        %123 = sbr.rel (%p120) target = $region12
      $region11: #{tpu_custom_call.1} parent=5 // pred_region
        %s124 = ssub.s32 %s16, 1
        // Predicated region
        $region13: #{tpu_custom_call.1} parent=11 // pred_check
          %p125 = pneg %p63
        $region14: #{tpu_custom_call.1} parent=11 // pred_check_branch
          %127 = sbr.rel (%p125) target = $region16
        $region15: #{tpu_custom_call.1} parent=11 // pred_region
          %s129 = ssub.s32 1024, 1024
          %130 = vsyncadd [#allocation6], %s129
          %s131 = sshll.u32 [#allocation5], 4
          %s132 = int_to_ptr.vmem [resolvable:$true] %s131
          %137 = dma.hbm_to_vmem [thread:$0]  %s1, 1024, %s132, [#allocation6], 64, 64, 4
        $region16: #{tpu_custom_call.1} parent=11 // pred_fallthru
          _
        // Predicated region
        $region17: #{tpu_custom_call.1} parent=11 // pred_check
          %p138 = pneg %p84
        $region18: #{tpu_custom_call.1} parent=11 // pred_check_branch
          %140 = sbr.rel (%p138) target = $region20
        $region19: #{tpu_custom_call.1} parent=11 // pred_region
          _
        $region20: #{tpu_custom_call.1} parent=11 // pred_fallthru
          _
      $region12: #{tpu_custom_call.1} parent=5 // pred_fallthru
        _
      %p141 = scmp.lt.s32.totalorder %s16, 2
      // Predicated region
      $region21: #{tpu_custom_call.1} parent=5 // pred_check
        %p142 = pneg %p141
      $region22: #{tpu_custom_call.1} parent=5 // pred_check_branch
        %144 = sbr.rel (%p142) target = $region24
      $region23: #{tpu_custom_call.1} parent=5 // pred_region
        // Predicated region
        $region25: #{tpu_custom_call.1} parent=23 // pred_check
          %p145 = pneg %p36
        $region26: #{tpu_custom_call.1} parent=23 // pred_check_branch
          %147 = sbr.rel (%p145) target = $region28
        $region27: #{tpu_custom_call.1} parent=23 // pred_region
          %s148 = sand.u32 %s26, 1
          %s149 = scalar_lea.sflag [#allocation3], %s148
          %s150 = sand.u32 %s26, 1
          %s151 = smul.addr %s150, 192
          %s152 = scalar_lea.vmem [#allocation2], %s151
          %s153 = smul.u32 48, %s16
          %s155 = ssub.s32 3072, 3072
          %156 = vsyncadd %s149, %s155
          %s157 = smul.addr %s153, 64
          %s158 = scalar_lea.hbm %s0, %s157
          %s159 = sshll.u32 %s152, 4
          %s160 = int_to_ptr.vmem [resolvable:$true] %s159
          %165 = dma.hbm_to_vmem [thread:$0]  %s158, 3072, %s160, %s149, 64, 64, 4
        $region28: #{tpu_custom_call.1} parent=23 // pred_fallthru
          _
      $region24: #{tpu_custom_call.1} parent=5 // pred_fallthru
        _
      %p166 = scmp.le.s32.totalorder 1, %s16
      %p167 = scmp.lt.s32.totalorder %s16, 3
      %p168 = pnand %p166, %p167
      %p169 = pneg %p168
      // Predicated region
      $region29: #{tpu_custom_call.1} parent=5 // pred_check
        _
      $region30: #{tpu_custom_call.1} parent=5 // pred_check_branch
        %171 = sbr.rel (%p168) target = $region32
      $region31: #{tpu_custom_call.1} parent=5 // pred_region
        %s172 = ssub.s32 %s16, 1
        %s173 = sand.u32 %s29, 1
        %s174 = scalar_lea.sflag [#allocation3], %s173
        %s175 = sand.u32 %s29, 1
        %s176 = smul.addr %s175, 192
        %s177 = scalar_lea.vmem [#allocation2], %s176
        // Predicated region
        $region33: #{tpu_custom_call.1} parent=31 // pred_check
          %p178 = pneg %p42
        $region34: #{tpu_custom_call.1} parent=31 // pred_check_branch
          %180 = sbr.rel (%p178) target = $region36
        $region35: #{tpu_custom_call.1} parent=31 // pred_region
          %181 = dma.done %s174, 3072
        $region36: #{tpu_custom_call.1} parent=31 // pred_fallthru
          _
        // Predicated region
        $region37: #{tpu_custom_call.1} parent=31 // pred_check
          %p182 = pneg %p63
        $region38: #{tpu_custom_call.1} parent=31 // pred_check_branch
          %184 = sbr.rel (%p182) target = $region40
        $region39: #{tpu_custom_call.1} parent=31 // pred_region
          %185 = dma.done [#allocation6], 1024
        $region40: #{tpu_custom_call.1} parent=31 // pred_fallthru
          _
        %s186 = sand.u32 %s29, 1
        %s187 = scalar_lea.sflag [#allocation3], %s186
        %s188 = sand.u32 %s29, 1
        %s189 = smul.addr %s188, 192
        %s190 = scalar_lea.vmem [#allocation2], %s189
        %p191 = pneg %p42
        %p192 = pneg %p39
        %p193 = pneg %p63
        %p194 = pneg %p60
        %p195 = pneg %p84
        %p196 = pneg %p81
        %p197 = pneg %p110
        %p198 = pneg %p107
        %s199 = sand.u32 %s97, 1
        %s200 = scalar_lea.sflag [#allocation4], %s199
        %s201 = sand.u32 %s97, 1
        %s202 = smul.addr %s201, 384
        %s203 = scalar_lea.vmem [#allocation7], %s202
        %s204 = smul.u32 48, %s21
        %s205 = smul.u32 48, %s21
        %v207 = vld [vmem:[%s177] sm:$0xf]
        %v208 = vld [vmem:[%s177 + $0x4] sm:$0xf]
        %v209 = vld [vmem:[%s177 + $0x8] sm:$0xf]
        %v210 = vld [vmem:[%s177 + $0xc] sm:$0xf]
        %v211 = vld [vmem:[%s177 + $0x10] sm:$0xf]
        %v212 = vld [vmem:[%s177 + $0x14] sm:$0xf]
        %v213 = vld [vmem:[%s177 + $0x18] sm:$0xf]
        %v214 = vld [vmem:[%s177 + $0x1c] sm:$0xf]
        %v215 = vld [vmem:[%s177 + $0x20] sm:$0xf]
        %v216 = vld [vmem:[%s177 + $0x24] sm:$0xf]
        %v217 = vld [vmem:[%s177 + $0x28] sm:$0xf]
        %v218 = vld [vmem:[%s177 + $0x2c] sm:$0xf]
        %v219 = vld [vmem:[%s177 + $0x30] sm:$0xf]
        %v220 = vld [vmem:[%s177 + $0x34] sm:$0xf]
        %v221 = vld [vmem:[%s177 + $0x38] sm:$0xf]
        %v222 = vld [vmem:[%s177 + $0x3c] sm:$0xf]
        %v223 = vld [vmem:[%s177 + $0x40] sm:$0xf]
        %v224 = vld [vmem:[%s177 + $0x44] sm:$0xf]
        %v225 = vld [vmem:[%s177 + $0x48] sm:$0xf]
        %v226 = vld [vmem:[%s177 + $0x4c] sm:$0xf]
        %v227 = vld [vmem:[%s177 + $0x50] sm:$0xf]
        %v228 = vld [vmem:[%s177 + $0x54] sm:$0xf]
        %v229 = vld [vmem:[%s177 + $0x58] sm:$0xf]
        %v230 = vld [vmem:[%s177 + $0x5c] sm:$0xf]
        %v231 = vld [vmem:[%s177 + $0x60] sm:$0xf]
        %v232 = vld [vmem:[%s177 + $0x64] sm:$0xf]
        %v233 = vld [vmem:[%s177 + $0x68] sm:$0xf]
        %v234 = vld [vmem:[%s177 + $0x6c] sm:$0xf]
        %v235 = vld [vmem:[%s177 + $0x70] sm:$0xf]
        %v236 = vld [vmem:[%s177 + $0x74] sm:$0xf]
        %v237 = vld [vmem:[%s177 + $0x78] sm:$0xf]
        %v238 = vld [vmem:[%s177 + $0x7c] sm:$0xf]
        %v239 = vld [vmem:[%s177 + $0x80] sm:$0xf]
        %v240 = vld [vmem:[%s177 + $0x84] sm:$0xf]
        %v241 = vld [vmem:[%s177 + $0x88] sm:$0xf]
        %v242 = vld [vmem:[%s177 + $0x8c] sm:$0xf]
        %v243 = vld [vmem:[%s177 + $0x90] sm:$0xf]
        %v244 = vld [vmem:[%s177 + $0x94] sm:$0xf]
        %v245 = vld [vmem:[%s177 + $0x98] sm:$0xf]
        %v246 = vld [vmem:[%s177 + $0x9c] sm:$0xf]
        %v247 = vld [vmem:[%s177 + $0xa0] sm:$0xf]
        %v248 = vld [vmem:[%s177 + $0xa4] sm:$0xf]
        %v249 = vld [vmem:[%s177 + $0xa8] sm:$0xf]
        %v250 = vld [vmem:[%s177 + $0xac] sm:$0xf]
        %v251 = vld [vmem:[%s177 + $0xb0] sm:$0xf]
        %v252 = vld [vmem:[%s177 + $0xb4] sm:$0xf]
        %v253 = vld [vmem:[%s177 + $0xb8] sm:$0xf]
        %v254 = vld [vmem:[%s177 + $0xbc] sm:$0xf]
        %v255 = vld [vmem:[#allocation5] sm:$0xf]
        %v256 = vld [vmem:[#allocation5 + $0x4] sm:$0xf]
        %v257 = vld [vmem:[#allocation5 + $0x8] sm:$0xf]
        %v258 = vld [vmem:[#allocation5 + $0xc] sm:$0xf]
        %v259 = vld [vmem:[#allocation5 + $0x10] sm:$0xf]
        %v260 = vld [vmem:[#allocation5 + $0x14] sm:$0xf]
        %v261 = vld [vmem:[#allocation5 + $0x18] sm:$0xf]
        %v262 = vld [vmem:[#allocation5 + $0x1c] sm:$0xf]
        %v263 = vld [vmem:[#allocation5 + $0x20] sm:$0xf]
        %v264 = vld [vmem:[#allocation5 + $0x24] sm:$0xf]
        %v265 = vld [vmem:[#allocation5 + $0x28] sm:$0xf]
        %v266 = vld [vmem:[#allocation5 + $0x2c] sm:$0xf]
        %v267 = vld [vmem:[#allocation5 + $0x30] sm:$0xf]
        %v268 = vld [vmem:[#allocation5 + $0x34] sm:$0xf]
        %v269 = vld [vmem:[#allocation5 + $0x38] sm:$0xf]
        %v270 = vld [vmem:[#allocation5 + $0x3c] sm:$0xf]
        %v271 = vld [vmem:[%s2] sm:$0x1]
        %v273 = vlaneseq
        %v274 = vshrl.u32 %v273, 7
        %v275 = vsub.s32 0, %v274
        %v276 = vrot.slane %v271, %v275
        %v326 = vunpack.c.l.b16 %v207
        %v327 = vunpack.c.l.b16 %v208
        %v328 = vunpack.c.l.b16 %v209
        %v329 = vunpack.c.l.b16 %v210
        %v330 = vunpack.c.l.b16 %v211
        %v331 = vunpack.c.l.b16 %v212
        %v332 = vunpack.c.l.b16 %v213
        %v333 = vunpack.c.l.b16 %v214
        %v334 = vunpack.c.l.b16 %v215
        %v335 = vunpack.c.l.b16 %v216
        %v336 = vunpack.c.l.b16 %v217
        %v337 = vunpack.c.l.b16 %v218
        %v338 = vunpack.c.l.b16 %v219
        %v339 = vunpack.c.l.b16 %v220
        %v340 = vunpack.c.l.b16 %v221
        %v341 = vunpack.c.l.b16 %v222
        %v342 = vunpack.c.l.b16 %v223
        %v343 = vunpack.c.l.b16 %v224
        %v344 = vunpack.c.l.b16 %v225
        %v345 = vunpack.c.l.b16 %v226
        %v346 = vunpack.c.l.b16 %v227
        %v347 = vunpack.c.l.b16 %v228
        %v348 = vunpack.c.l.b16 %v229
        %v349 = vunpack.c.l.b16 %v230
        %v350 = vunpack.c.l.b16 %v231
        %v351 = vunpack.c.l.b16 %v232
        %v352 = vunpack.c.l.b16 %v233
        %v353 = vunpack.c.l.b16 %v234
        %v354 = vunpack.c.l.b16 %v235
        %v355 = vunpack.c.l.b16 %v236
        %v356 = vunpack.c.l.b16 %v237
        %v357 = vunpack.c.l.b16 %v238
        %v358 = vunpack.c.l.b16 %v239
        %v359 = vunpack.c.l.b16 %v240
        %v360 = vunpack.c.l.b16 %v241
        %v361 = vunpack.c.l.b16 %v242
        %v362 = vunpack.c.l.b16 %v243
        %v363 = vunpack.c.l.b16 %v244
        %v364 = vunpack.c.l.b16 %v245
        %v365 = vunpack.c.l.b16 %v246
        %v366 = vunpack.c.l.b16 %v247
        %v367 = vunpack.c.l.b16 %v248
        %v368 = vunpack.c.l.b16 %v249
        %v369 = vunpack.c.l.b16 %v250
        %v370 = vunpack.c.l.b16 %v251
        %v371 = vunpack.c.l.b16 %v252
        %v372 = vunpack.c.l.b16 %v253
        %v373 = vunpack.c.l.b16 %v254
        %v374 = vpack.c.b16 %v327, %v326
        %v375 = vpack.c.b16 %v329, %v328
        %v376 = vpack.c.b16 %v331, %v330
        %v377 = vpack.c.b16 %v333, %v332
        %v378 = vpack.c.b16 %v335, %v334
        %v379 = vpack.c.b16 %v337, %v336
        %v380 = vpack.c.b16 %v339, %v338
        %v381 = vpack.c.b16 %v341, %v340
        %v382 = vpack.c.b16 %v343, %v342
        %v383 = vpack.c.b16 %v345, %v344
        %v384 = vpack.c.b16 %v347, %v346
        %v385 = vpack.c.b16 %v349, %v348
        %v386 = vpack.c.b16 %v351, %v350
        %v387 = vpack.c.b16 %v353, %v352
        %v388 = vpack.c.b16 %v355, %v354
        %v389 = vpack.c.b16 %v357, %v356
        %v390 = vpack.c.b16 %v359, %v358
        %v391 = vpack.c.b16 %v361, %v360
        %v392 = vpack.c.b16 %v363, %v362
        %v393 = vpack.c.b16 %v365, %v364
        %v394 = vpack.c.b16 %v367, %v366
        %v395 = vpack.c.b16 %v369, %v368
        %v396 = vpack.c.b16 %v371, %v370
        %v397 = vpack.c.b16 %v373, %v372
        %v438 = vunpack.c.l.b16 %v255
        %v439 = vunpack.c.l.b16 %v256
        %v440 = vunpack.c.l.b16 %v257
        %v441 = vunpack.c.l.b16 %v258
        %v442 = vunpack.c.l.b16 %v259
        %v443 = vunpack.c.l.b16 %v260
        %v444 = vunpack.c.l.b16 %v261
        %v445 = vunpack.c.l.b16 %v262
        %v446 = vunpack.c.l.b16 %v263
        %v447 = vunpack.c.l.b16 %v264
        %v448 = vunpack.c.l.b16 %v265
        %v449 = vunpack.c.l.b16 %v266
        %v450 = vunpack.c.l.b16 %v267
        %v451 = vunpack.c.l.b16 %v268
        %v452 = vunpack.c.l.b16 %v269
        %v453 = vunpack.c.l.b16 %v270
        %v454 = vpack.c.b16 %v439, %v438
        %v455 = vpack.c.b16 %v441, %v440
        %v456 = vpack.c.b16 %v443, %v442
        %v457 = vpack.c.b16 %v445, %v444
        %v458 = vpack.c.b16 %v447, %v446
        %v459 = vpack.c.b16 %v449, %v448
        %v460 = vpack.c.b16 %v451, %v450
        %v461 = vpack.c.b16 %v453, %v452
        %470 = vmatprep.subr.bf16.mxu0 0
        %471 = vmatpush1.bf16.msra.mxu0 %v454
        %472 = vmatprep.subr.bf16.mxu0 0
        %473 = vmatpush1.bf16.msra.mxu0 %v455
        %474 = vmatprep.subr.bf16.mxu0 0
        %475 = vmatpush1.bf16.msra.mxu0 %v456
        %476 = vmatprep.subr.bf16.mxu0 0
        %477 = vmatpush1.bf16.msra.mxu0 %v457
        %478 = vmatprep.subr.bf16.mxu0 0
        %479 = vmatpush1.bf16.msra.mxu0 %v458
        %480 = vmatprep.subr.bf16.mxu0 0
        %481 = vmatpush1.bf16.msra.mxu0 %v459
        %482 = vmatprep.subr.bf16.mxu0 0
        %483 = vmatpush1.bf16.msra.mxu0 %v460
        %484 = vmatprep.subr.bf16.mxu0 0
        %485 = vmatpush1.bf16.msra.mxu0 %v461
        %486 = vmatprep.subr.bf16.mxu0 0
        %487 = vmatpush1.bf16.msra.mxu0 0
        %488 = vmatprep.subr.bf16.mxu0 0
        %489 = vmatpush1.bf16.msra.mxu0 0
        %490 = vmatprep.subr.bf16.mxu0 0
        %491 = vmatpush1.bf16.msra.mxu0 0
        %492 = vmatprep.subr.bf16.mxu0 0
        %493 = vmatpush1.bf16.msra.mxu0 0
        %494 = vmatprep.subr.bf16.mxu0 0
        %495 = vmatpush1.bf16.msra.mxu0 0
        %496 = vmatprep.subr.bf16.mxu0 0
        %497 = vmatpush1.bf16.msra.mxu0 0
        %498 = vmatprep.subr.bf16.mxu0 0
        %499 = vmatpush1.bf16.msra.mxu0 0
        %500 = vmatprep.subr.bf16.mxu0 0
        %501 = vmatpush1.bf16.msra.mxu0 0
        %502 = vmatprep.mubr.bf16.mxu0 0
        %503 = vmatmul.mubr.bf16.gmra.mrb[0].mxu0 %v374
        %v504 = vpop.f32.mrb[0].mxu0
        %v505 = vadd.f32 %v276, %v504
        %v506 = vpop.f32.mrb[0].mxu0
        %v507 = vpop.f32.mrb[0].mxu0
        %v508 = vadd.f32 %v276, %v507
        %v509 = vpop.f32.mrb[0].mxu0
        %510 = vmatprep.mubr.bf16.mxu0 0
        %511 = vmatmul.mubr.bf16.gmra.mrb[0].mxu0 %v375
        %v512 = vpop.f32.mrb[0].mxu0
        %v513 = vadd.f32 %v276, %v512
        %v514 = vpop.f32.mrb[0].mxu0
        %v515 = vpop.f32.mrb[0].mxu0
        %v516 = vadd.f32 %v276, %v515
        %v517 = vpop.f32.mrb[0].mxu0
        %518 = vmatprep.mubr.bf16.mxu0 0
        %519 = vmatmul.mubr.bf16.gmra.mrb[0].mxu0 %v376
        %v520 = vpop.f32.mrb[0].mxu0
        %v521 = vadd.f32 %v276, %v520
        %v522 = vpop.f32.mrb[0].mxu0
        %v523 = vpop.f32.mrb[0].mxu0
        %v524 = vadd.f32 %v276, %v523
        %v525 = vpop.f32.mrb[0].mxu0
        %526 = vmatprep.mubr.bf16.mxu0 0
        %527 = vmatmul.mubr.bf16.gmra.mrb[0].mxu0 %v377
        %v528 = vpop.f32.mrb[0].mxu0
        %v529 = vadd.f32 %v276, %v528
        %v530 = vpop.f32.mrb[0].mxu0
        %v531 = vpop.f32.mrb[0].mxu0
        %v532 = vadd.f32 %v276, %v531
        %v533 = vpop.f32.mrb[0].mxu0
        %534 = vmatprep.mubr.bf16.mxu0 0
        %535 = vmatmul.mubr.bf16.gmra.mrb[0].mxu0 %v378
        %v536 = vpop.f32.mrb[0].mxu0
        %v537 = vadd.f32 %v276, %v536
        %v538 = vpop.f32.mrb[0].mxu0
        %v539 = vpop.f32.mrb[0].mxu0
        %v540 = vadd.f32 %v276, %v539
        %v541 = vpop.f32.mrb[0].mxu0
        %542 = vmatprep.mubr.bf16.mxu0 0
        %543 = vmatmul.mubr.bf16.gmra.mrb[0].mxu0 %v379
        %v544 = vpop.f32.mrb[0].mxu0
        %v545 = vadd.f32 %v276, %v544
        %v546 = vpop.f32.mrb[0].mxu0
        %v547 = vpop.f32.mrb[0].mxu0
        %v548 = vadd.f32 %v276, %v547
        %v549 = vpop.f32.mrb[0].mxu0
        %550 = vmatprep.mubr.bf16.mxu0 0
        %551 = vmatmul.mubr.bf16.gmra.mrb[0].mxu0 %v380
        %v552 = vpop.f32.mrb[0].mxu0
        %v553 = vadd.f32 %v276, %v552
        %v554 = vpop.f32.mrb[0].mxu0
        %v555 = vpop.f32.mrb[0].mxu0
        %v556 = vadd.f32 %v276, %v555
        %v557 = vpop.f32.mrb[0].mxu0
        %558 = vmatprep.mubr.bf16.mxu0 0
        %559 = vmatmul.mubr.bf16.gmra.mrb[0].mxu0 %v381
        %v560 = vpop.f32.mrb[0].mxu0
        %v561 = vadd.f32 %v276, %v560
        %v562 = vpop.f32.mrb[0].mxu0
        %v563 = vpop.f32.mrb[0].mxu0
        %v564 = vadd.f32 %v276, %v563
        %v565 = vpop.f32.mrb[0].mxu0
        %566 = vmatprep.mubr.bf16.mxu0 0
        %567 = vmatmul.mubr.bf16.gmra.mrb[0].mxu0 %v382
        %v568 = vpop.f32.mrb[0].mxu0
        %v569 = vadd.f32 %v276, %v568
        %v570 = vpop.f32.mrb[0].mxu0
        %v571 = vpop.f32.mrb[0].mxu0
        %v572 = vadd.f32 %v276, %v571
        %v573 = vpop.f32.mrb[0].mxu0
        %574 = vmatprep.mubr.bf16.mxu0 0
        %575 = vmatmul.mubr.bf16.gmra.mrb[0].mxu0 %v383
        %v576 = vpop.f32.mrb[0].mxu0
        %v577 = vadd.f32 %v276, %v576
        %v578 = vpop.f32.mrb[0].mxu0
        %v579 = vpop.f32.mrb[0].mxu0
        %v580 = vadd.f32 %v276, %v579
        %v581 = vpop.f32.mrb[0].mxu0
        %582 = vmatprep.mubr.bf16.mxu0 0
        %583 = vmatmul.mubr.bf16.gmra.mrb[0].mxu0 %v384
        %v584 = vpop.f32.mrb[0].mxu0
        %v585 = vadd.f32 %v276, %v584
        %v586 = vpop.f32.mrb[0].mxu0
        %v587 = vpop.f32.mrb[0].mxu0
        %v588 = vadd.f32 %v276, %v587
        %v589 = vpop.f32.mrb[0].mxu0
        %590 = vmatprep.mubr.bf16.mxu0 0
        %591 = vmatmul.mubr.bf16.gmra.mrb[0].mxu0 %v385
        %v592 = vpop.f32.mrb[0].mxu0
        %v593 = vadd.f32 %v276, %v592
        %v594 = vpop.f32.mrb[0].mxu0
        %v595 = vpop.f32.mrb[0].mxu0
        %v596 = vadd.f32 %v276, %v595
        %v597 = vpop.f32.mrb[0].mxu0
        %598 = vmatprep.mubr.bf16.mxu0 0
        %599 = vmatmul.mubr.bf16.gmra.mrb[0].mxu0 %v386
        %v600 = vpop.f32.mrb[0].mxu0
        %v601 = vadd.f32 %v276, %v600
        %v602 = vpop.f32.mrb[0].mxu0
        %v603 = vpop.f32.mrb[0].mxu0
        %v604 = vadd.f32 %v276, %v603
        %v605 = vpop.f32.mrb[0].mxu0
        %606 = vmatprep.mubr.bf16.mxu0 0
        %607 = vmatmul.mubr.bf16.gmra.mrb[0].mxu0 %v387
        %v608 = vpop.f32.mrb[0].mxu0
        %v609 = vadd.f32 %v276, %v608
        %v610 = vpop.f32.mrb[0].mxu0
        %v611 = vpop.f32.mrb[0].mxu0
        %v612 = vadd.f32 %v276, %v611
        %v613 = vpop.f32.mrb[0].mxu0
        %614 = vmatprep.mubr.bf16.mxu0 0
        %615 = vmatmul.mubr.bf16.gmra.mrb[0].mxu0 %v388
        %v616 = vpop.f32.mrb[0].mxu0
        %v617 = vadd.f32 %v276, %v616
        %v618 = vpop.f32.mrb[0].mxu0
        %v619 = vpop.f32.mrb[0].mxu0
        %v620 = vadd.f32 %v276, %v619
        %v621 = vpop.f32.mrb[0].mxu0
        %622 = vmatprep.mubr.bf16.mxu0 0
        %623 = vmatmul.mubr.bf16.gmra.mrb[0].mxu0 %v389
        %v624 = vpop.f32.mrb[0].mxu0
        %v625 = vadd.f32 %v276, %v624
        %v626 = vpop.f32.mrb[0].mxu0
        %v627 = vpop.f32.mrb[0].mxu0
        %v628 = vadd.f32 %v276, %v627
        %v629 = vpop.f32.mrb[0].mxu0
        %630 = vmatprep.mubr.bf16.mxu0 0
        %631 = vmatmul.mubr.bf16.gmra.mrb[0].mxu0 %v390
        %v632 = vpop.f32.mrb[0].mxu0
        %v633 = vadd.f32 %v276, %v632
        %v634 = vpop.f32.mrb[0].mxu0
        %v635 = vpop.f32.mrb[0].mxu0
        %v636 = vadd.f32 %v276, %v635
        %v637 = vpop.f32.mrb[0].mxu0
        %638 = vmatprep.mubr.bf16.mxu0 0
        %639 = vmatmul.mubr.bf16.gmra.mrb[0].mxu0 %v391
        %v640 = vpop.f32.mrb[0].mxu0
        %v641 = vadd.f32 %v276, %v640
        %v642 = vpop.f32.mrb[0].mxu0
        %v643 = vpop.f32.mrb[0].mxu0
        %v644 = vadd.f32 %v276, %v643
        %v645 = vpop.f32.mrb[0].mxu0
        %646 = vmatprep.mubr.bf16.mxu0 0
        %647 = vmatmul.mubr.bf16.gmra.mrb[0].mxu0 %v392
        %v648 = vpop.f32.mrb[0].mxu0
        %v649 = vadd.f32 %v276, %v648
        %v650 = vpop.f32.mrb[0].mxu0
        %v651 = vpop.f32.mrb[0].mxu0
        %v652 = vadd.f32 %v276, %v651
        %v653 = vpop.f32.mrb[0].mxu0
        %654 = vmatprep.mubr.bf16.mxu0 0
        %655 = vmatmul.mubr.bf16.gmra.mrb[0].mxu0 %v393
        %v656 = vpop.f32.mrb[0].mxu0
        %v657 = vadd.f32 %v276, %v656
        %v658 = vpop.f32.mrb[0].mxu0
        %v659 = vpop.f32.mrb[0].mxu0
        %v660 = vadd.f32 %v276, %v659
        %v661 = vpop.f32.mrb[0].mxu0
        %662 = vmatprep.mubr.bf16.mxu0 0
        %663 = vmatmul.mubr.bf16.gmra.mrb[0].mxu0 %v394
        %v664 = vpop.f32.mrb[0].mxu0
        %v665 = vadd.f32 %v276, %v664
        %v666 = vpop.f32.mrb[0].mxu0
        %v667 = vpop.f32.mrb[0].mxu0
        %v668 = vadd.f32 %v276, %v667
        %v669 = vpop.f32.mrb[0].mxu0
        %670 = vmatprep.mubr.bf16.mxu0 0
        %671 = vmatmul.mubr.bf16.gmra.mrb[0].mxu0 %v395
        %v672 = vpop.f32.mrb[0].mxu0
        %v673 = vadd.f32 %v276, %v672
        %v674 = vpop.f32.mrb[0].mxu0
        %v675 = vpop.f32.mrb[0].mxu0
        %v676 = vadd.f32 %v276, %v675
        %v677 = vpop.f32.mrb[0].mxu0
        %678 = vmatprep.mubr.bf16.mxu0 0
        %679 = vmatmul.mubr.bf16.gmra.mrb[0].mxu0 %v396
        %v680 = vpop.f32.mrb[0].mxu0
        %v681 = vadd.f32 %v276, %v680
        %v682 = vpop.f32.mrb[0].mxu0
        %v683 = vpop.f32.mrb[0].mxu0
        %v684 = vadd.f32 %v276, %v683
        %v685 = vpop.f32.mrb[0].mxu0
        %686 = vmatprep.mubr.bf16.mxu0 0
        %687 = vmatmul.mubr.bf16.gmra.mrb[0].mxu0 %v397
        %v688 = vpop.f32.mrb[0].mxu0
        %v689 = vadd.f32 %v276, %v688
        %v690 = vpop.f32.mrb[0].mxu0
        %v691 = vpop.f32.mrb[0].mxu0
        %v692 = vadd.f32 %v276, %v691
        %v693 = vpop.f32.mrb[0].mxu0
        %694 = vdwg.mxu0
        %v695 = vtanh.pop %v505
        %v696 = vtanh.pop %v508
        %v697 = vtanh.pop %v513
        %v698 = vtanh.pop %v516
        %v699 = vtanh.pop %v521
        %v700 = vtanh.pop %v524
        %v701 = vtanh.pop %v529
        %v702 = vtanh.pop %v532
        %v703 = vtanh.pop %v537
        %v704 = vtanh.pop %v540
        %v705 = vtanh.pop %v545
        %v706 = vtanh.pop %v548
        %v707 = vtanh.pop %v553
        %v708 = vtanh.pop %v556
        %v709 = vtanh.pop %v561
        %v710 = vtanh.pop %v564
        %v711 = vtanh.pop %v569
        %v712 = vtanh.pop %v572
        %v713 = vtanh.pop %v577
        %v714 = vtanh.pop %v580
        %v715 = vtanh.pop %v585
        %v716 = vtanh.pop %v588
        %v717 = vtanh.pop %v593
        %v718 = vtanh.pop %v596
        %v719 = vtanh.pop %v601
        %v720 = vtanh.pop %v604
        %v721 = vtanh.pop %v609
        %v722 = vtanh.pop %v612
        %v723 = vtanh.pop %v617
        %v724 = vtanh.pop %v620
        %v725 = vtanh.pop %v625
        %v726 = vtanh.pop %v628
        %v727 = vtanh.pop %v633
        %v728 = vtanh.pop %v636
        %v729 = vtanh.pop %v641
        %v730 = vtanh.pop %v644
        %v731 = vtanh.pop %v649
        %v732 = vtanh.pop %v652
        %v733 = vtanh.pop %v657
        %v734 = vtanh.pop %v660
        %v735 = vtanh.pop %v665
        %v736 = vtanh.pop %v668
        %v737 = vtanh.pop %v673
        %v738 = vtanh.pop %v676
        %v739 = vtanh.pop %v681
        %v740 = vtanh.pop %v684
        %v741 = vtanh.pop %v689
        %v742 = vtanh.pop %v692
        %743 = vst [vmem:[%s203] sm:$0xff] %v695
        %744 = vst [vmem:[%s203 + $0x8] sm:$0xff] %v696
        %745 = vst [vmem:[%s203 + $0x10] sm:$0xff] %v697
        %746 = vst [vmem:[%s203 + $0x18] sm:$0xff] %v698
        %747 = vst [vmem:[%s203 + $0x20] sm:$0xff] %v699
        %748 = vst [vmem:[%s203 + $0x28] sm:$0xff] %v700
        %749 = vst [vmem:[%s203 + $0x30] sm:$0xff] %v701
        %750 = vst [vmem:[%s203 + $0x38] sm:$0xff] %v702
        %751 = vst [vmem:[%s203 + $0x40] sm:$0xff] %v703
        %752 = vst [vmem:[%s203 + $0x48] sm:$0xff] %v704
        %753 = vst [vmem:[%s203 + $0x50] sm:$0xff] %v705
        %754 = vst [vmem:[%s203 + $0x58] sm:$0xff] %v706
        %755 = vst [vmem:[%s203 + $0x60] sm:$0xff] %v707
        %756 = vst [vmem:[%s203 + $0x68] sm:$0xff] %v708
        %757 = vst [vmem:[%s203 + $0x70] sm:$0xff] %v709
        %758 = vst [vmem:[%s203 + $0x78] sm:$0xff] %v710
        %759 = vst [vmem:[%s203 + $0x80] sm:$0xff] %v711
        %760 = vst [vmem:[%s203 + $0x88] sm:$0xff] %v712
        %761 = vst [vmem:[%s203 + $0x90] sm:$0xff] %v713
        %762 = vst [vmem:[%s203 + $0x98] sm:$0xff] %v714
        %763 = vst [vmem:[%s203 + $0xa0] sm:$0xff] %v715
        %764 = vst [vmem:[%s203 + $0xa8] sm:$0xff] %v716
        %765 = vst [vmem:[%s203 + $0xb0] sm:$0xff] %v717
        %766 = vst [vmem:[%s203 + $0xb8] sm:$0xff] %v718
        %767 = vst [vmem:[%s203 + $0xc0] sm:$0xff] %v719
        %768 = vst [vmem:[%s203 + $0xc8] sm:$0xff] %v720
        %769 = vst [vmem:[%s203 + $0xd0] sm:$0xff] %v721
        %770 = vst [vmem:[%s203 + $0xd8] sm:$0xff] %v722
        %771 = vst [vmem:[%s203 + $0xe0] sm:$0xff] %v723
        %772 = vst [vmem:[%s203 + $0xe8] sm:$0xff] %v724
        %773 = vst [vmem:[%s203 + $0xf0] sm:$0xff] %v725
        %774 = vst [vmem:[%s203 + $0xf8] sm:$0xff] %v726
        %775 = vst [vmem:[%s203 + $0x100] sm:$0xff] %v727
        %776 = vst [vmem:[%s203 + $0x108] sm:$0xff] %v728
        %777 = vst [vmem:[%s203 + $0x110] sm:$0xff] %v729
        %778 = vst [vmem:[%s203 + $0x118] sm:$0xff] %v730
        %779 = vst [vmem:[%s203 + $0x120] sm:$0xff] %v731
        %780 = vst [vmem:[%s203 + $0x128] sm:$0xff] %v732
        %781 = vst [vmem:[%s203 + $0x130] sm:$0xff] %v733
        %782 = vst [vmem:[%s203 + $0x138] sm:$0xff] %v734
        %783 = vst [vmem:[%s203 + $0x140] sm:$0xff] %v735
        %784 = vst [vmem:[%s203 + $0x148] sm:$0xff] %v736
        %785 = vst [vmem:[%s203 + $0x150] sm:$0xff] %v737
        %786 = vst [vmem:[%s203 + $0x158] sm:$0xff] %v738
        %787 = vst [vmem:[%s203 + $0x160] sm:$0xff] %v739
        %788 = vst [vmem:[%s203 + $0x168] sm:$0xff] %v740
        %789 = vst [vmem:[%s203 + $0x170] sm:$0xff] %v741
        %790 = vst [vmem:[%s203 + $0x178] sm:$0xff] %v742
        %s791 = sand.u32 %s97, 1
        %s792 = scalar_lea.sflag [#allocation4], %s791
        %s793 = sand.u32 %s97, 1
        %s794 = smul.addr %s793, 384
        %s795 = scalar_lea.vmem [#allocation7], %s794
        // Predicated region
        $region41: #{tpu_custom_call.1} parent=31 // pred_check
          %p796 = pneg %p107
        $region42: #{tpu_custom_call.1} parent=31 // pred_check_branch
          %798 = sbr.rel (%p796) target = $region44
        $region43: #{tpu_custom_call.1} parent=31 // pred_region
          %s799 = smul.u32 48, %s21
          %s801 = ssub.s32 6144, 6144
          %802 = vsyncadd %s792, %s801
          %s803 = smul.addr %s799, 128
          %s804 = scalar_lea.hbm %s3, %s803
          %s805 = sshll.u32 %s795, 4
          %s806 = int_to_ptr.vmem [resolvable:$true] %s805
          %811 = dma.vmem_to_hbm [thread:$0]  %s806, 6144, %s804, %s792, 128, 128, 8
        $region44: #{tpu_custom_call.1} parent=31 // pred_fallthru
          _
      $region32: #{tpu_custom_call.1} parent=5 // pred_fallthru
        _
      %p812 = scmp.le.s32.totalorder 2, %s16
      // Predicated region
      $region45: #{tpu_custom_call.1} parent=5 // pred_check
        %p813 = pneg %p812
      $region46: #{tpu_custom_call.1} parent=5 // pred_check_branch
        %815 = sbr.rel (%p813) target = $region48
      $region47: #{tpu_custom_call.1} parent=5 // pred_region
        %s816 = ssub.s32 %s16, 2
        // Predicated region
        $region49: #{tpu_custom_call.1} parent=47 // pred_check
          %p817 = pneg %p113
        $region50: #{tpu_custom_call.1} parent=47 // pred_check_branch
          %819 = sbr.rel (%p817) target = $region52
        $region51: #{tpu_custom_call.1} parent=47 // pred_region
          %s820 = sand.u32 %s98, 1
          %s821 = scalar_lea.sflag [#allocation4], %s820
          %s822 = sand.u32 %s98, 1
          %s823 = smul.addr %s822, 384
          %s824 = scalar_lea.vmem [#allocation7], %s823
          %825 = dma.done %s821, 6144
        $region52: #{tpu_custom_call.1} parent=47 // pred_fallthru
          _
      $region48: #{tpu_custom_call.1} parent=5 // pred_fallthru
        _
    $region6: #{tpu_custom_call.1} parent=1 // loop_footer
      %s20 = sadd.s32 1, %s16
    $region7: #{tpu_custom_call.1} parent=1 // loop_footer_branch
      %15 = sbr.rel target = $region3
    $region8: #{tpu_custom_call.1} parent=1 // loop_exit
      _
    %826 = vsyncpa [#allocation3], 1
    %s827 = scalar_lea.sflag [#allocation3], 1
    %828 = vsyncpa %s827, 1
    %829 = vsyncpa [#allocation6], 1
    %830 = vsyncpa [#allocation4], 1
    %s831 = scalar_lea.sflag [#allocation4], 1
    %832 = vsyncpa %s831, 1

</llo_original>
